<compile_context>
chip_gen: v7x
topology: tpu7x:2x2x1
jax: 0.10.0
libtpu: 0.0.40
codegen_flags: <defaults>
</compile_context>

<pallas_src>
import functools
import math

import jax
import jax.numpy as jnp
import numpy as np
from jax.experimental import pallas as pl
from jax.experimental.pallas import tpu as pltpu


def _round_up(x: int, m: int) -> int:
    return ((x + m - 1) // m) * m


def _pe_gen_kernel(const_ref, out_ref, *, rows_per_tile):
    """Fill one (rows_per_tile, W) slab tile: out[r, c] = sin(r*scale[c]+bias[c])."""
    TR = rows_per_tile
    W = out_ref.shape[1]
    base = pl.program_id(0) * TR
    r = jax.lax.broadcasted_iota(jnp.int32, (TR, W), 0) + base
    scale = const_ref[0:1, :]                      # (1, W) resident constant
    bias = const_ref[1:2, :]                       # (1, W)
    out_ref[...] = jnp.sin(r.astype(jnp.float32) * scale + bias)


def _pe_copy_kernel(src_ref, out_ref):
    out_ref[...] = src_ref[...]


class PositionalEmbedding:
    """Pallas forward of the sinusoidal PositionalEmbedding module."""

    def __init__(self, d_model: int, max_len: int = 5000):
        assert d_model % 2 == 0, "d_model must be even (as in the torch module)"
        self.d_model = d_model
        self.max_len = max_len

        # --- init-time (register_buffer equivalent), hoisted out of forward ---
        half = np.exp(
            np.arange(0, d_model, 2, dtype=np.float32)
            * (-(math.log(10000.0) / d_model))
        )                                                   # (d_model//2,)
        inv_freq = np.repeat(half, 2)                       # (d_model,)
        # even dims -> sin, odd dims -> cos == sin(angle + pi/2)
        phase = np.tile(np.array([0.0, math.pi / 2], np.float32), d_model // 2)

        # Lane-dense packing: R positions per 128-lane row when possible.
        if d_model <= 128 and 128 % d_model == 0:
            self.R = 128 // d_model
        else:
            self.R = 1
        R = self.R
        self.W = R * d_model
        # slab element (row, c) holds dim (c % d_model) of position row*R + c//d_model
        tok_off = np.repeat(np.arange(R, dtype=np.float32), d_model)   # (W,)
        inv_freq_w = np.tile(inv_freq, R)
        phase_w = np.tile(phase, R)
        scale = (R * inv_freq_w).astype(np.float32)                    # angle = row*scale + bias
        bias = (tok_off * inv_freq_w + phase_w).astype(np.float32)
        self._const = jnp.asarray(np.stack([scale, bias], axis=0))     # (2, W)

        # Probe once whether the in-kernel sin path lowers on this Mosaic build;
        # otherwise fall back to streaming a precomputed (init-time) table
        # through the identical tiled, lane-dense pipeline.
        self._table = None
        try:
            probe = pl.pallas_call(
                functools.partial(_pe_gen_kernel, rows_per_tile=8),
                out_shape=jax.ShapeDtypeStruct((8, self.W), jnp.float32),
                grid=(1,),
                in_specs=[pl.BlockSpec((2, self.W), lambda i: (0, 0))],
                out_specs=pl.BlockSpec((8, self.W), lambda i: (i, 0)),
                compiler_params=pltpu.CompilerParams(
                    dimension_semantics=("parallel",)
                ),
            )(self._const)
            jax.block_until_ready(probe)
            self._use_generator = True
        except Exception:
            self._use_generator = False
            rows_total = _round_up(pl.cdiv(max_len, R), 256)
            const_np = np.asarray(self._const)
            rr = np.arange(rows_total, dtype=np.float32)[:, None]
            self._table = jnp.asarray(
                np.sin(rr * const_np[0] + const_np[1]).astype(np.float32)
            )                                                          # (rows_total, W)

    def __call__(self, x):
        # forward(x) == pe[:, :x.size(1)] -> (1, L, d_model), values independent of x.
        L = min(int(x.shape[1]), self.max_len)
        D, R, W = self.d_model, self.R, self.W
        rows = pl.cdiv(L, R)                       # slab rows needed
        TR = 256 if rows >= 256 else _round_up(rows, 8)
        rows_pad = _round_up(rows, TR)
        grid = (rows_pad // TR,)
        out_shape = jax.ShapeDtypeStruct((rows_pad, W), jnp.float32)
        out_spec = pl.BlockSpec((TR, W), lambda i: (i, 0))
        cparams = pltpu.CompilerParams(dimension_semantics=("parallel",))

        if self._use_generator:
            slab = pl.pallas_call(
                functools.partial(_pe_gen_kernel, rows_per_tile=TR),
                out_shape=out_shape,
                grid=grid,
                in_specs=[pl.BlockSpec((2, W), lambda i: (0, 0))],   # resident
                out_specs=out_spec,
                compiler_params=cparams,
            )(self._const)
        else:
            slab = pl.pallas_call(
                _pe_copy_kernel,
                out_shape=out_shape,
                grid=grid,
                in_specs=[pl.BlockSpec((TR, W), lambda i: (i, 0))],
                out_specs=out_spec,
                compiler_params=cparams,
            )(self._table)

        pe = slab.reshape(rows_pad * R, D)[:L]     # free row-major un-packing
        return pe[None, :, :]                      # (1, L, d_model)


def _reference_pe(L, d_model):
    # numpy mirror of the torch __init__ formula
    pos = np.arange(L, dtype=np.float32)[:, None]
    div = np.exp(
        np.arange(0, d_model, 2, dtype=np.float32) * (-(math.log(10000.0) / d_model))
    )
    pe = np.zeros((L, d_model), np.float32)
    pe[:, 0::2] = np.sin(pos * div)
    pe[:, 1::2] = np.cos(pos * div)
    return pe[None]


if __name__ == "__main__":
    key = jax.random.PRNGKey(0)
    D_MODEL = 32
    pe_mod = PositionalEmbedding(D_MODEL, max_len=5000)

    # Small case: B=2, L=8, d_model=32 (single 8-row tile, 4 tokens packed/row).
    B, L = 2, 8
    x = jax.random.normal(key, (B, L, D_MODEL), dtype=jnp.float32)
    out = jax.block_until_ready(pe_mod(x))
    assert out.shape == (1, L, D_MODEL)
    assert np.allclose(np.asarray(out), _reference_pe(L, D_MODEL), atol=1e-3), \
        "small-L mismatch vs reference"

    # Longer sequence exercises the multi-tile parallel grid (rows_pad=512 -> 2 tiles).
    L2 = 1100
    x2 = jnp.zeros((1, L2, D_MODEL), jnp.float32)
    out2 = jax.block_until_ready(pe_mod(x2))
    assert out2.shape == (1, L2, D_MODEL)
    assert np.allclose(np.asarray(out2), _reference_pe(L2, D_MODEL), atol=5e-3), \
        "large-L mismatch vs reference"

    print("KERNEL_OK")
</pallas_src>

<mosaic_0001>
module attributes {stable_mosaic.version = 11 : i64} {
  func.func @_pe_gen_kernel(%arg0: i32, %arg1: memref<2x128xf32, #tpu.memory_space<vmem>>, %arg2: memref<8x128xf32, #tpu.memory_space<vmem>>) attributes {dimension_semantics = [#tpu.dimension_semantics<parallel>], iteration_bounds = array<i64: 1>, scalar_prefetch = 0 : i64, scratch_operands = 0 : i64, tpu.core_type = #tpu.core_type<tc>, window_params = [{pipeline_mode = #tpu.pipeline_mode<synchronous>, transform_indices = @transform_0, window_bounds = array<i64: 2, 128>}, {transform_indices = @transform_1, window_bounds = array<i64: 8, 128>}]} {
    %c8_i32 = arith.constant 8 : i32
    %0 = arith.muli %arg0, %c8_i32 : i32
    %1 = tpu.iota {dimensions = array<i32: 0>} : vector<8x128xi32>
    %2 = vector.broadcast %0 : i32 to vector<8x128xi32>
    %3 = arith.addi %1, %2 : vector<8x128xi32>
    %c0 = arith.constant 0 : index
    %c0_0 = arith.constant 0 : index
    %4 = vector.load %arg1[%c0, %c0_0] : memref<2x128xf32, #tpu.memory_space<vmem>>, vector<1x128xf32>
    %c1 = arith.constant 1 : index
    %c0_1 = arith.constant 0 : index
    %5 = vector.load %arg1[%c1, %c0_1] : memref<2x128xf32, #tpu.memory_space<vmem>>, vector<1x128xf32>
    %6 = arith.sitofp %3 : vector<8x128xi32> to vector<8x128xf32>
    %7 = vector.broadcast %4 : vector<1x128xf32> to vector<8x128xf32>
    %8 = arith.mulf %6, %7 : vector<8x128xf32>
    %9 = vector.broadcast %5 : vector<1x128xf32> to vector<8x128xf32>
    %10 = arith.addf %8, %9 : vector<8x128xf32>
    %11 = math.sin %10 : vector<8x128xf32>
    %c0_2 = arith.constant 0 : index
    %c0_3 = arith.constant 0 : index
    %12 = vector.load %arg2[%c0_2, %c0_3] : memref<8x128xf32, #tpu.memory_space<vmem>>, vector<8x128xf32>
    tpu.vector_store %arg2[%c0_2, %c0_3], %11 {strides = array<i32>} : memref<8x128xf32, #tpu.memory_space<vmem>>, vector<8x128xf32>,
    return
  }
  func.func @transform_0(%arg0: i32) -> (i32, i32) {
    %c0_i32 = arith.constant 0 : i32
    %c0_i32_0 = arith.constant 0 : i32
    %c0_i32_1 = arith.constant 0 : i32
    return %c0_i32, %c0_i32_0 : i32, i32
  }
  func.func @transform_1(%arg0: i32) -> (i32, i32) {
    %c0_i32 = arith.constant 0 : i32
    %c0_i32_0 = arith.constant 0 : i32
    return %arg0, %c0_i32 : i32, i32
  }
}

module attributes {stable_mosaic.version = 11 : i64} {
  func.func @_pe_copy_kernel(%arg0: i32, %arg1: memref<8x128xf32, #tpu.memory_space<vmem>>, %arg2: memref<8x128xf32, #tpu.memory_space<vmem>>) attributes {dimension_semantics = [#tpu.dimension_semantics<parallel>], iteration_bounds = array<i64: 1>, scalar_prefetch = 0 : i64, scratch_operands = 0 : i64, tpu.core_type = #tpu.core_type<tc>, window_params = [{transform_indices = @transform_0, window_bounds = array<i64: 8, 128>}, {transform_indices = @transform_1, window_bounds = array<i64: 8, 128>}]} {
    %c0 = arith.constant 0 : index
    %c0_0 = arith.constant 0 : index
    %0 = vector.load %arg1[%c0, %c0_0] : memref<8x128xf32, #tpu.memory_space<vmem>>, vector<8x128xf32>
    %c0_1 = arith.constant 0 : index
    %c0_2 = arith.constant 0 : index
    %1 = vector.load %arg2[%c0_1, %c0_2] : memref<8x128xf32, #tpu.memory_space<vmem>>, vector<8x128xf32>
    tpu.vector_store %arg2[%c0_1, %c0_2], %0 {strides = array<i32>} : memref<8x128xf32, #tpu.memory_space<vmem>>, vector<8x128xf32>,
    return
  }
  func.func @transform_0(%arg0: i32) -> (i32, i32) {
    %c0_i32 = arith.constant 0 : i32
    %c0_i32_0 = arith.constant 0 : i32
    return %arg0, %c0_i32 : i32, i32
  }
  func.func @transform_1(%arg0: i32) -> (i32, i32) {
    %c0_i32 = arith.constant 0 : i32
    %c0_i32_0 = arith.constant 0 : i32
    return %arg0, %c0_i32 : i32, i32
  }
}

</mosaic_0001>

<llo_original>
// kernel: tpu_custom_call.1
$region0: #{tpu_custom_call.1}
  #allocation0 [shape = 'u32[]', space=smem, size = 0x4, offset = 0x4, fixed_abs, tag = 'smem constant byte address 0x4 - core index']
  #allocation1 [shape = 'u32[144,128]{1,0:T(1,128)}', space=vmem, size = 0x12000, scoped, tag = 'internal scratch']
  %s0 = inlined_call_operand.hbm [shape: f32[2,128], index: 0, kind: input, shape index: {}]
  %s1 = inlined_call_operand.hbm [shape: f32[8,128], index: 1, kind: output, shape index: {}]
  %s2 = sld [smem:[#allocation0]]
  $region18: #{tpu_custom_call.1} parent=0
    _
  %s4 = ssub.s32 1, %s2
  %s5 = scalar_select 0, %s4, %s2
  $region1: #{tpu_custom_call.1} parent=0
    #allocation2 [shape = 'u8[1024]{0}', space=vmem, size = 0x400, scoped, tag = 'input window, operand 0, single buffered']
    #allocation3 [shape = 's32[1]{0}', space=sflag, size = 0x4, scoped, tag = 'scoped memory for tpu_custom_call.1']
    #allocation4 [shape = 's32[1]{0}', space=sflag, size = 0x4, scoped, tag = 'scoped memory for tpu_custom_call.1']
    #allocation5 [shape = 'u8[4096]{0}', space=vmem, size = 0x1000, scoped, tag = 'output window, operand 0, single buffered']
    %6 = vsyncpa [#allocation3], 0
    %7 = vsyncpa [#allocation4], 0
    // Predicated region
    $region2: #{tpu_custom_call.1} parent=1 // pred_check
      _
    $region3: #{tpu_custom_call.1} parent=1 // pred_check_branch
      %9 = sbr.rel (0) target = $region5
    $region4: #{tpu_custom_call.1} parent=1 // pred_region
      %s11 = ssub.s32 32, 32
      %12 = vsyncadd [#allocation3], %s11
      %s14 = sshll.u32 [#allocation2], 4
      %s15 = int_to_ptr.vmem [resolvable:$true] %s14
      %17 = dma.hbm_to_vmem [thread:$0]  %s0, 32, %s15, [#allocation3]
    $region5: #{tpu_custom_call.1} parent=1 // pred_fallthru
      _
    // Predicated region
    $region6: #{tpu_custom_call.1} parent=1 // pred_check
      _
    $region7: #{tpu_custom_call.1} parent=1 // pred_check_branch
      %19 = sbr.rel (0) target = $region9
    $region8: #{tpu_custom_call.1} parent=1 // pred_region
      %20 = dma.done [#allocation3], 32
    $region9: #{tpu_custom_call.1} parent=1 // pred_fallthru
      _
    %s21 = smul.u32 0, 8
    %v22 = vlaneseq
    %v23 = vshrl.u32 %v22, 7
    %v24 = vstv %s21
    %v25 = vadd.s32 %v23, %v24
    %v26 = vld [vmem:[#allocation2] sm:$0x1]
    %v27 = vld [vmem:[#allocation2 + $0x1] sm:$0x1]
    %v28 = vcvt.s32.f32 %v25
    %v29 = vlaneseq
    %v30 = vshrl.u32 %v29, 7
    %v31 = vsub.s32 0, %v30
    %v32 = vrot.slane %v26, %v31
    %v33 = vmul.f32 %v28, %v32
    %v34 = vlaneseq
    %v35 = vshrl.u32 %v34, 7
    %v36 = vsub.s32 0, %v35
    %v37 = vrot.slane %v27, %v36
    %v38 = vadd.f32 %v33, %v37
    %v39 = vand.u32 2147483647, %v38
    %vm40 = vcmp.le.f32.partialorder %v39, 0.7853982
    %vm41 = vcmp.lt.s32.totalorder %v38, 0
    %v42 = vand.u32 %v38, 2139095040
    %v43 = vshrl.u32 %v42, 23
    %v44 = vsub.s32 %v43, 127
    %v45 = vand.u32 2147483647, %v38
    %v46 = vand.u32 %v45, 8388607
    %v47 = vor.u32 %v46, 8388608
    %v48 = vsub.s32 0, %v47
    %v49 = vadd.s32 %v44, 1
    %vm50 = vcmp.gt.s32.totalorder %v49, 0
    %v51 = vsel %vm50, %v49, 0
    %v52 = vshrl.u32 %v51, 5
    %v53 = vand.u32 %v51, 31
    %v54 = vsub.s32 32, %v53
    %v55 = vshrl.u32 683565275, %v54
    %v56 = vshll.u32 683565275, %v53
    %v57 = vshrl.u32 2475754826, %v54
    %v58 = vor.u32 %v56, %v57
    %v59 = vshll.u32 2475754826, %v53
    %v60 = vshrl.u32 2131351028, %v54
    %v61 = vor.u32 %v59, %v60
    %v62 = vshll.u32 2131351028, %v53
    %v63 = vshrl.u32 2102212464, %v54
    %v64 = vor.u32 %v62, %v63
    %v65 = vshll.u32 2102212464, %v53
    %v66 = vshrl.u32 920167782, %v54
    %v67 = vor.u32 %v65, %v66
    %v68 = vshll.u32 920167782, %v53
    %v69 = vshrl.u32 1326507024, %v54
    %v70 = vor.u32 %v68, %v69
    %vm71 = vcmp.lt.s32.totalorder %v52, 1
    %vm72 = vcmp.lt.s32.totalorder %v52, 2
    %vm73 = vcmp.lt.s32.totalorder %v52, 3
    %vm74 = vcmp.lt.s32.totalorder %v52, 4
    %v75 = vsel %vm71, %v55, %v58
    %v76 = vsel %vm74, %v64, 2102212464
    %v77 = vsel %vm73, %v61, %v76
    %v78 = vsel %vm72, %v75, %v77
    %v79 = vsel %vm71, %v58, %v61
    %v80 = vsel %vm74, %v67, 920167782
    %v81 = vsel %vm73, %v64, %v80
    %v82 = vsel %vm72, %v79, %v81
    %v83 = vsel %vm71, %v61, %v64
    %v84 = vsel %vm74, %v70, 1326507024
    %v85 = vsel %vm73, %v67, %v84
    %v86 = vsel %vm72, %v83, %v85
    %v87 = vshll.u32 %v47, 8
    %v88 = vmul.u32.u64.compose %v87, %v86
    %v89 = vextract.low.u32 %v88
    %v90 = vextract.high.u32 %v88
    %v91 = vmul.u32.u64.compose %v87, %v82
    %v92 = vextract.low.u32 %v91
    %v93 = vextract.high.u32 %v91
    %v94 = vmul.u32 %v87, %v78
    %v95 = vadd.s32 %v90, %v92
    %vm96 = vc.u32 %v90, %v92
    %v97 = vadd.s32 %v93, 1
    %v98 = vsel %vm96, %v97, %v93
    %v99 = vadd.s32 %v94, %v98
    %v100 = vadd.s32 %v99, 536870912
    %v101 = vshrl.u32 %v100, 30
    %v102 = vshll.u32 %v101, 30
    %v103 = vsub.s32 %v99, %v102
    %vm104 = vcmp.lt.s32.totalorder %v103, 0
    %v105 = vsub.s32 0, %v103
    %v106 = vsel %vm104, %v105, %v103
    %v107 = vclz %v106
    %v108 = vsub.s32 %v107, 2
    %vm109 = vcmp.gt.s32.totalorder 0, %v108
    %v110 = vsel %vm109, 0, %v108
    %v111 = vsub.s32 32, %v110
    %v112 = vshll.u32 %v103, %v110
    %v113 = vshrl.u32 %v95, %v111
    %v114 = vor.u32 %v112, %v113
    %v115 = vsub.s32 4294967266, %v110
    %v116 = vadd.s32 %v115, 127
    %v117 = vshll.u32 %v116, 23
    %v118 = vor.u32 4788187, %v117
    %v119 = vand.u32 2147483647, %v118
    %v121 = vcvt.s32.f32 %v114
    %v122 = vmul.f32 %v121, %v119
    %v123 = vxor.u32 %v122, 2147483648
    %v124 = vsel %vm41, %v123, %v122
    %v125 = vsub.s32 4, %v101
    %v126 = vsel %vm41, %v125, %v101
    %v127 = vsel %vm40, %v38, %v124
    %v128 = vsel %vm40, 0, %v126
    %v129 = vcosq.f32.pop %v127
    %v130 = vsinq.f32.pop %v127
    %vm131 = vweird.f32 %v38
    %v132 = vadd.s32 %v128, 3
    %v133 = vand.u32 %v132, 3
    %vm134 = vcmp.lt.s32.totalorder %v133, 2
    %vm135 = vcmp.eq.s32.totalorder %v133, 0
    %v136 = vxor.u32 %v130, 2147483648
    %v137 = vsel %vm135, %v129, %v136
    %vm138 = vcmp.eq.s32.totalorder %v133, 2
    %v139 = vxor.u32 %v129, 2147483648
    %v140 = vsel %vm138, %v139, %v130
    %v141 = vsel %vm134, %v137, %v140
    %v142 = vsel %vm131, nan, %v141
    %143 = vst [vmem:[#allocation5] sm:$0xff] %v142
    // Predicated region
    $region10: #{tpu_custom_call.1} parent=1 // pred_check
      _
    $region11: #{tpu_custom_call.1} parent=1 // pred_check_branch
      %145 = sbr.rel (0) target = $region13
    $region12: #{tpu_custom_call.1} parent=1 // pred_region
      %s147 = ssub.s32 128, 128
      %148 = vsyncadd [#allocation4], %s147
      %s150 = sshll.u32 [#allocation5], 4
      %s151 = int_to_ptr.vmem [resolvable:$true] %s150
      %153 = dma.vmem_to_hbm [thread:$0]  %s151, 128, %s1, [#allocation4]
    $region13: #{tpu_custom_call.1} parent=1 // pred_fallthru
      _
    // Predicated region
    $region14: #{tpu_custom_call.1} parent=1 // pred_check
      _
    $region15: #{tpu_custom_call.1} parent=1 // pred_check_branch
      %155 = sbr.rel (0) target = $region17
    $region16: #{tpu_custom_call.1} parent=1 // pred_region
      %156 = dma.done [#allocation4], 128
    $region17: #{tpu_custom_call.1} parent=1 // pred_fallthru
      _
    %157 = vsyncpa [#allocation3], 1
    %158 = vsyncpa [#allocation4], 1

// kernel: tpu_custom_call.1
$region0: #{tpu_custom_call.1}
  #allocation0 [shape = 'u32[]', space=smem, size = 0x4, offset = 0x4, fixed_abs, tag = 'smem constant byte address 0x4 - core index']
  #allocation1 [shape = 'u32[144,128]{1,0:T(1,128)}', space=vmem, size = 0x12000, scoped, tag = 'internal scratch']
  %s0 = inlined_call_operand.hbm [shape: f32[1280,128], index: 0, kind: input, shape index: {}]
  %s1 = inlined_call_operand.hbm [shape: f32[8,128], index: 1, kind: output, shape index: {}]
  %s2 = sld [smem:[#allocation0]]
  $region18: #{tpu_custom_call.1} parent=0
    _
  %s4 = ssub.s32 1, %s2
  %s5 = scalar_select 0, %s4, %s2
  $region1: #{tpu_custom_call.1} parent=0
    #allocation2 [shape = 'u8[4096]{0}', space=vmem, size = 0x1000, scoped, tag = 'input window, operand 0, single buffered']
    #allocation3 [shape = 's32[1]{0}', space=sflag, size = 0x4, scoped, tag = 'scoped memory for tpu_custom_call.1']
    #allocation4 [shape = 's32[1]{0}', space=sflag, size = 0x4, scoped, tag = 'scoped memory for tpu_custom_call.1']
    #allocation5 [shape = 'u8[4096]{0}', space=vmem, size = 0x1000, scoped, tag = 'output window, operand 0, single buffered']
    %6 = vsyncpa [#allocation3], 0
    %7 = vsyncpa [#allocation4], 0
    // Predicated region
    $region2: #{tpu_custom_call.1} parent=1 // pred_check
      _
    $region3: #{tpu_custom_call.1} parent=1 // pred_check_branch
      %9 = sbr.rel (0) target = $region5
    $region4: #{tpu_custom_call.1} parent=1 // pred_region
      %s11 = ssub.s32 128, 128
      %12 = vsyncadd [#allocation3], %s11
      %s14 = sshll.u32 [#allocation2], 4
      %s15 = int_to_ptr.vmem [resolvable:$true] %s14
      %17 = dma.hbm_to_vmem [thread:$0]  %s0, 128, %s15, [#allocation3]
    $region5: #{tpu_custom_call.1} parent=1 // pred_fallthru
      _
    // Predicated region
    $region6: #{tpu_custom_call.1} parent=1 // pred_check
      _
    $region7: #{tpu_custom_call.1} parent=1 // pred_check_branch
      %19 = sbr.rel (0) target = $region9
    $region8: #{tpu_custom_call.1} parent=1 // pred_region
      %20 = dma.done [#allocation3], 128
    $region9: #{tpu_custom_call.1} parent=1 // pred_fallthru
      _
    %v21 = vld [vmem:[#allocation2] sm:$0xff]
    %22 = vst [vmem:[#allocation5] sm:$0xff] %v21
    // Predicated region
    $region10: #{tpu_custom_call.1} parent=1 // pred_check
      _
    $region11: #{tpu_custom_call.1} parent=1 // pred_check_branch
      %24 = sbr.rel (0) target = $region13
    $region12: #{tpu_custom_call.1} parent=1 // pred_region
      %s26 = ssub.s32 128, 128
      %27 = vsyncadd [#allocation4], %s26
      %s29 = sshll.u32 [#allocation5], 4
      %s30 = int_to_ptr.vmem [resolvable:$true] %s29
      %32 = dma.vmem_to_hbm [thread:$0]  %s30, 128, %s1, [#allocation4]
    $region13: #{tpu_custom_call.1} parent=1 // pred_fallthru
      _
    // Predicated region
    $region14: #{tpu_custom_call.1} parent=1 // pred_check
      _
    $region15: #{tpu_custom_call.1} parent=1 // pred_check_branch
      %34 = sbr.rel (0) target = $region17
    $region16: #{tpu_custom_call.1} parent=1 // pred_region
      %35 = dma.done [#allocation4], 128
    $region17: #{tpu_custom_call.1} parent=1 // pred_fallthru
      _
    %36 = vsyncpa [#allocation3], 1
    %37 = vsyncpa [#allocation4], 1

</llo_original>
